<compile_context>
chip_gen: v7x
topology: tpu7x:2x2x1
jax: 0.10.0
libtpu: 0.0.40
codegen_flags: <defaults>
</compile_context>

<pallas_src>
import jax
import jax.numpy as jnp
from jax import lax
from jax.experimental import pallas as pl
from jax.experimental.pallas import tpu as pltpu

EPS = 1e-5  # nn.BatchNorm2d default eps


def _round_up(x, m):
    return (x + m - 1) // m * m


# ------------- Kernel 1: conv as matmul + per-tile channel sum / sum-of-squares -------------
def conv_stats_kernel(p_ref, w_ref, y_ref, st_ref):
    # K fits in a single block (tk == Kp) -> one MXU shot, no reduction grid axis.
    y = jnp.dot(p_ref[...], w_ref[...], preferred_element_type=jnp.float32)
    y_ref[...] = y
    # Per-tile partial statistics; padded rows/columns are zero so they contribute nothing.
    st_ref[...] = jnp.zeros_like(st_ref)
    st_ref[0:1, :] = jnp.sum(y, axis=0, keepdims=True)
    st_ref[1:2, :] = jnp.sum(y * y, axis=0, keepdims=True)


# ------------------------------ Kernel 2: BN affine + PReLU ---------------------------------
def bn_prelu_kernel(alpha_ref, y_ref, scale_ref, shift_ref, o_ref):
    z = y_ref[...] * scale_ref[...] + shift_ref[...]
    a = alpha_ref[0]  # single shared PReLU parameter, read from SMEM
    o_ref[...] = jnp.where(z >= 0, z, a * z)


# -------------------------------------------- Wrapper ---------------------------------------
def convolution_layer_forward(x, weight, bias, gamma, beta, alpha, *, stride, padding):
    del bias  # cancels exactly under training-mode BatchNorm (see header note)
    N, C, H, W = x.shape
    OC, _, KH, KW = weight.shape
    OH = (H + 2 * padding - KH) // stride + 1
    OW = (W + 2 * padding - KW) // stride + 1

    # ---- im2col (XLA glue; in-kernel assembly is the path for large real shapes) ----
    xp = jnp.pad(x, ((0, 0), (0, 0), (padding, padding), (padding, padding)))
    patches = []
    for kh in range(KH):
        for kw in range(KW):
            patches.append(xp[:, :, kh:kh + stride * (OH - 1) + 1:stride,
                                     kw:kw + stride * (OW - 1) + 1:stride])  # (N, C, OH, OW)
    pt = jnp.stack(patches, axis=0).reshape(KH, KW, N, C, OH, OW)
    pt = jnp.transpose(pt, (2, 4, 5, 3, 0, 1))  # (N, OH, OW, C, KH, KW) matches weight layout
    M = N * OH * OW
    K = C * KH * KW
    pmat = pt.reshape(M, K).astype(jnp.float32)
    wmat = weight.reshape(OC, K).T.astype(jnp.float32)  # (K, OC)

    # ---- pad to MXU-friendly tiles; tk == Kp collapses the K grid axis ----
    tm, tn = 256, 128
    Mp, Kp, Np = _round_up(M, tm), _round_up(K, 128), _round_up(OC, tn)
    pmat = jnp.pad(pmat, ((0, Mp - M), (0, Kp - K)))
    wmat = jnp.pad(wmat, ((0, Kp - K), (0, Np - OC)))
    n_mt = Mp // tm

    # ---- Kernel 1: conv matmul + fused per-channel partial statistics ----
    y, st = pl.pallas_call(
        conv_stats_kernel,
        out_shape=(jax.ShapeDtypeStruct((Mp, Np), jnp.float32),
                   jax.ShapeDtypeStruct((n_mt * 8, Np), jnp.float32)),
        grid_spec=pltpu.PrefetchScalarGridSpec(
            num_scalar_prefetch=0,
            grid=(n_mt, Np // tn),
            in_specs=[pl.BlockSpec((tm, Kp), lambda m, n: (m, 0)),
                      pl.BlockSpec((Kp, tn), lambda m, n: (0, n))],
            out_specs=(pl.BlockSpec((tm, tn), lambda m, n: (m, n)),
                       pl.BlockSpec((8, tn), lambda m, n: (m, n)))),
        compiler_params=pltpu.CompilerParams(
            dimension_semantics=("parallel", "parallel")),
    )(pmat, wmat)

    # ---- finalize batch stats and fold BN affine into scale/shift (tiny XLA ops) ----
    stp = st.reshape(n_mt, 8, Np)
    ch_sum = jnp.sum(stp[:, 0, :], axis=0)          # (Np,)
    ch_sq = jnp.sum(stp[:, 1, :], axis=0)           # (Np,)
    mean = ch_sum / M
    var = ch_sq / M - mean * mean                   # biased variance (training-mode BN)
    inv_std = lax.rsqrt(var + EPS)
    gamma_p = jnp.pad(gamma.astype(jnp.float32), (0, Np - OC))
    beta_p = jnp.pad(beta.astype(jnp.float32), (0, Np - OC))
    scale = (gamma_p * inv_std).reshape(1, Np)
    shift = (beta_p - mean * gamma_p * inv_std).reshape(1, Np)
    alpha_s = jnp.asarray(alpha, jnp.float32).reshape(1)

    # ---- Kernel 2: normalize (single FMA) + PReLU ----
    out = pl.pallas_call(
        bn_prelu_kernel,
        out_shape=jax.ShapeDtypeStruct((Mp, Np), jnp.float32),
        grid_spec=pltpu.PrefetchScalarGridSpec(
            num_scalar_prefetch=0,
            grid=(n_mt, Np // tn),
            in_specs=[pl.BlockSpec(memory_space=pltpu.MemorySpace.SMEM),  # alpha scalar
                      pl.BlockSpec((tm, tn), lambda m, n: (m, n)),
                      pl.BlockSpec((1, tn), lambda m, n: (0, n)),
                      pl.BlockSpec((1, tn), lambda m, n: (0, n))],
            out_specs=pl.BlockSpec((tm, tn), lambda m, n: (m, n))),
        compiler_params=pltpu.CompilerParams(
            dimension_semantics=("parallel", "parallel")),
    )(alpha_s, y, scale, shift)

    out = out[:M, :OC].reshape(N, OH, OW, OC)
    return jnp.transpose(out, (0, 3, 1, 2))  # back to NCHW


# ------------------------------------- reference (pure JAX) --------------------------------
def reference_forward(x, weight, bias, gamma, beta, alpha, *, stride, padding):
    y = lax.conv_general_dilated(
        x.astype(jnp.float32), weight.astype(jnp.float32),
        window_strides=(stride, stride),
        padding=[(padding, padding), (padding, padding)],
        dimension_numbers=("NCHW", "OIHW", "NCHW"))
    y = y + bias.reshape(1, -1, 1, 1)   # reference keeps the bias; it cancels under BN
    mean = jnp.mean(y, axis=(0, 2, 3), keepdims=True)
    var = jnp.mean((y - mean) ** 2, axis=(0, 2, 3), keepdims=True)
    z = (y - mean) * lax.rsqrt(var + EPS) * gamma.reshape(1, -1, 1, 1) + beta.reshape(1, -1, 1, 1)
    return jnp.where(z >= 0, z, alpha * z)


if __name__ == "__main__":
    # Module config (small shapes consistent with the PyTorch module)
    in_channels, out_channels, ksize, stride, padding = 4, 8, 3, 1, 1
    N, H, W = 2, 16, 16

    key = jax.random.PRNGKey(0)
    kx, kw, kb = jax.random.split(key, 3)
    x = jax.random.normal(kx, (N, in_channels, H, W), jnp.float32)

    # Deterministic parameter init (kaiming-uniform-like bounds for conv, BN defaults, PReLU=0.25)
    fan_in = in_channels * ksize * ksize
    bound = 1.0 / jnp.sqrt(fan_in)
    weight = jax.random.uniform(kw, (out_channels, in_channels, ksize, ksize),
                                jnp.float32, -bound, bound)
    bias = jax.random.uniform(kb, (out_channels,), jnp.float32, -bound, bound)
    gamma = jnp.ones((out_channels,), jnp.float32)
    beta = jnp.zeros((out_channels,), jnp.float32)
    alpha = jnp.float32(0.25)

    out = convolution_layer_forward(x, weight, bias, gamma, beta, alpha,
                                    stride=stride, padding=padding)
    out = jax.block_until_ready(out)

    ref = reference_forward(x, weight, bias, gamma, beta, alpha,
                            stride=stride, padding=padding)
    assert out.shape == ref.shape == (N, out_channels, H, W)
    assert jnp.allclose(out, ref, rtol=1e-3, atol=1e-3), "mismatch vs JAX reference"

    print("KERNEL_OK")
</pallas_src>

<mosaic_0001>
module attributes {stable_mosaic.version = 11 : i64} {
  func.func @conv_stats_kernel(%arg0: i32, %arg1: i32, %arg2: memref<256x128xf32, #tpu.memory_space<vmem>>, %arg3: memref<128x128xf32, #tpu.memory_space<vmem>>, %arg4: memref<256x128xf32, #tpu.memory_space<vmem>>, %arg5: memref<8x128xf32, #tpu.memory_space<vmem>>) attributes {dimension_semantics = [#tpu.dimension_semantics<parallel>, #tpu.dimension_semantics<parallel>], iteration_bounds = array<i64: 2, 1>, scalar_prefetch = 0 : i64, scratch_operands = 0 : i64, tpu.core_type = #tpu.core_type<tc>, window_params = [{transform_indices = @transform_0, window_bounds = array<i64: 256, 128>}, {transform_indices = @transform_1, window_bounds = array<i64: 128, 128>}, {transform_indices = @transform_2, window_bounds = array<i64: 256, 128>}, {transform_indices = @transform_3, window_bounds = array<i64: 8, 128>}]} {
    %c0 = arith.constant 0 : index
    %c0_0 = arith.constant 0 : index
    %0 = vector.load %arg2[%c0, %c0_0] : memref<256x128xf32, #tpu.memory_space<vmem>>, vector<256x128xf32>
    %c0_1 = arith.constant 0 : index
    %c0_2 = arith.constant 0 : index
    %1 = vector.load %arg3[%c0_1, %c0_2] : memref<128x128xf32, #tpu.memory_space<vmem>>, vector<128x128xf32>
    %cst = arith.constant dense<0.000000e+00> : vector<256x128xf32>
    %2 = tpu.matmul %0, %1, %cst {dimension_numbers = #tpu.dot_dimension_numbers<[1], [0], [0], [1], [0, 0, 1, 1], [], []>} : vector<256x128xf32>, vector<128x128xf32>, vector<256x128xf32> -> vector<256x128xf32>
    %c0_3 = arith.constant 0 : index
    %c0_4 = arith.constant 0 : index
    %3 = vector.load %arg4[%c0_3, %c0_4] : memref<256x128xf32, #tpu.memory_space<vmem>>, vector<256x128xf32>
    tpu.vector_store %arg4[%c0_3, %c0_4], %2 {strides = array<i32>} : memref<256x128xf32, #tpu.memory_space<vmem>>, vector<256x128xf32>,
    %cst_5 = arith.constant 0.000000e+00 : f32
    %4 = vector.broadcast %cst_5 : f32 to vector<8x128xf32>
    %c0_6 = arith.constant 0 : index
    %c0_7 = arith.constant 0 : index
    %5 = vector.load %arg5[%c0_6, %c0_7] : memref<8x128xf32, #tpu.memory_space<vmem>>, vector<8x128xf32>
    tpu.vector_store %arg5[%c0_6, %c0_7], %4 {strides = array<i32>} : memref<8x128xf32, #tpu.memory_space<vmem>>, vector<8x128xf32>,
    %cst_8 = arith.constant dense<0.000000e+00> : vector<128xf32>
    %6 = vector.multi_reduction <add>, %2, %cst_8 [0] : vector<256x128xf32> to vector<128xf32>
    %7 = vector.shape_cast %6 : vector<128xf32> to vector<1x128xf32>
    %c0_9 = arith.constant 0 : index
    %c0_10 = arith.constant 0 : index
    %8 = vector.load %arg5[%c0_9, %c0_10] : memref<8x128xf32, #tpu.memory_space<vmem>>, vector<1x128xf32>
    tpu.vector_store %arg5[%c0_9, %c0_10], %7 {strides = array<i32>} : memref<8x128xf32, #tpu.memory_space<vmem>>, vector<1x128xf32>,
    %9 = arith.mulf %2, %2 : vector<256x128xf32>
    %cst_11 = arith.constant dense<0.000000e+00> : vector<128xf32>
    %10 = vector.multi_reduction <add>, %9, %cst_11 [0] : vector<256x128xf32> to vector<128xf32>
    %11 = vector.shape_cast %10 : vector<128xf32> to vector<1x128xf32>
    %c1 = arith.constant 1 : index
    %c0_12 = arith.constant 0 : index
    %12 = vector.load %arg5[%c1, %c0_12] : memref<8x128xf32, #tpu.memory_space<vmem>>, vector<1x128xf32>
    tpu.vector_store %arg5[%c1, %c0_12], %11 {strides = array<i32>} : memref<8x128xf32, #tpu.memory_space<vmem>>, vector<1x128xf32>,
    return
  }
  func.func @transform_0(%arg0: i32, %arg1: i32) -> (i32, i32) {
    %c0_i32 = arith.constant 0 : i32
    %c0_i32_0 = arith.constant 0 : i32
    return %arg0, %c0_i32 : i32, i32
  }
  func.func @transform_1(%arg0: i32, %arg1: i32) -> (i32, i32) {
    %c0_i32 = arith.constant 0 : i32
    %c0_i32_0 = arith.constant 0 : i32
    return %c0_i32, %arg1 : i32, i32
  }
  func.func @transform_2(%arg0: i32, %arg1: i32) -> (i32, i32) {
    %c0_i32 = arith.constant 0 : i32
    return %arg0, %arg1 : i32, i32
  }
  func.func @transform_3(%arg0: i32, %arg1: i32) -> (i32, i32) {
    %c0_i32 = arith.constant 0 : i32
    return %arg0, %arg1 : i32, i32
  }
}

</mosaic_0001>

<llo_original>
// kernel: tpu_custom_call.1
$region0: #{tpu_custom_call.1}
  #allocation0 [shape = 'u32[]', space=smem, size = 0x4, offset = 0x4, fixed_abs, tag = 'smem constant byte address 0x4 - core index']
  #allocation1 [shape = 'u32[144,128]{1,0:T(1,128)}', space=vmem, size = 0x12000, scoped, tag = 'internal scratch']
  %s0 = inlined_call_operand.hbm [shape: f32[512,128], index: 0, kind: input, shape index: {}]
  %s1 = inlined_call_operand.hbm [shape: f32[128,128], index: 1, kind: input, shape index: {}]
  %s2 = inlined_call_operand.hbm [shape: f32[512,128], index: 2, kind: output, shape index: {0}]
  %s3 = inlined_call_operand.hbm [shape: f32[16,128], index: 3, kind: output, shape index: {1}]
  %4 = xla_tuple %s2, %s3
  %s5 = sld [smem:[#allocation0]]
  $region57: #{tpu_custom_call.1} parent=0
    _
  %s7 = ssub.s32 1, %s5
  %s8 = scalar_select 0, %s7, %s5
  $region1: #{tpu_custom_call.1} parent=0
    #allocation2 [shape = 'u8[262144]{0}', space=vmem, size = 0x40000, scoped, tag = 'input window, operand 0']
    #allocation3 [shape = 's32[2]{0}', space=sflag, size = 0x8, scoped, tag = 'scoped memory for tpu_custom_call.1']
    #allocation4 [shape = 's32[2]{0}', space=sflag, size = 0x8, scoped, tag = 'scoped memory for tpu_custom_call.1']
    #allocation5 [shape = 'u8[65536]{0}', space=vmem, size = 0x10000, scoped, tag = 'input window, operand 1, single buffered']
    #allocation6 [shape = 's32[1]{0}', space=sflag, size = 0x4, scoped, tag = 'scoped memory for tpu_custom_call.1']
    #allocation7 [shape = 'u8[262144]{0}', space=vmem, size = 0x40000, scoped, tag = 'output window, operand 0']
    #allocation8 [shape = 'u8[8192]{0}', space=vmem, size = 0x2000, scoped, tag = 'output window, operand 1']
    #allocation9 [shape = 's32[2]{0}', space=sflag, size = 0x8, scoped, tag = 'scoped memory for tpu_custom_call.1']
    %9 = vsyncpa [#allocation3], 0
    %s10 = scalar_lea.sflag [#allocation3], 1
    %11 = vsyncpa %s10, 0
    %12 = vsyncpa [#allocation6], 0
    %13 = vsyncpa [#allocation4], 0
    %s14 = scalar_lea.sflag [#allocation4], 1
    %15 = vsyncpa %s14, 0
    %16 = vsyncpa [#allocation9], 0
    %s17 = scalar_lea.sflag [#allocation9], 1
    %18 = vsyncpa %s17, 0
    loop: start=0, step=1, limit=4
    $region2: #{tpu_custom_call.1} parent=1 // loop_pre_header
      _
    $region3: #{tpu_custom_call.1} parent=1 // loop_header
      %s20 = sphi 0, %s24
      %p21 = scmp.ge.s32.totalorder %s20, 4
      %s27 = sphi 0, %s39
      %s28 = sphi 0, %s35
      %s29 = sphi 0, %s27
      %s30 = sphi 0, %s28
      %s31 = sphi 0, %s29
      %s32 = sphi 0, %s30
      %s42 = sphi 0, %s44
      %s45 = sphi 0, %s42
      %s46 = sphi 0, %s45
      %s62 = sphi 0, %s46
      %s68 = sphi 0, %s70
      %s71 = sphi 0, %s68
      %s72 = sphi 0, %s71
      %s88 = sphi 0, %s72
      %s96 = sphi 0, %s98
      %s99 = sphi 0, %s96
      %s100 = sphi 0, %s99
      %s116 = sphi 0, %s100
      %s124 = sphi 0, %s126
      %s127 = sphi 0, %s124
      %s128 = sphi 0, %s127
      %s144 = sphi 0, %s128
    $region4: #{tpu_custom_call.1} parent=1 // loop_header_branch
      %23 = sbr.rel (%p21) target = $region8
    $region5: #{tpu_custom_call.1} parent=1 // loop_body
      %s25 = ssub.s32 %s20, 1
      %s26 = ssub.s32 %s20, 2
      %s33 = sadd.s32 1, %s28
      %p34 = scmp.ge.s32.totalorder %s33, 1
      %s35 = scalar_select %p34, 0, %s33
      %s36 = sadd.s32 1, %s27
      %s37 = scalar_select %p34, %s36, %s27
      %p38 = scmp.ge.s32.totalorder %s37, 2
      %s39 = scalar_select %p38, 0, %s37
      %s40 = ssub.s32 %s27, %s39
      %p41 = scmp.eq.s32.totalorder %s40, 0
      %s43 = sadd.s32 %s42, 1
      %s44 = scalar_select %p41, %s42, %s43
      %p47 = pneg %p41
      %p48 = scmp.eq.s32.totalorder %s20, 1
      %p49 = por %p47, %p48
      %p50 = scmp.ne.s32.totalorder %s42, %s45
      %p51 = scmp.eq.s32.totalorder %s20, 0
      %p52 = por %p50, %p51
      %p53 = scmp.ne.s32.totalorder %s42, %s45
      %p54 = scmp.eq.s32.totalorder %s25, 1
      %p55 = por %p53, %p54
      %p56 = scmp.ne.s32.totalorder %s45, %s46
      %p57 = scmp.eq.s32.totalorder %s25, 0
      %p58 = por %p56, %p57
      %p59 = scmp.ne.s32.totalorder %s45, %s46
      %p60 = scmp.eq.s32.totalorder %s26, 1
      %p61 = por %p59, %p60
      %p63 = scmp.ne.s32.totalorder %s46, %s62
      %p64 = scmp.eq.s32.totalorder %s26, 0
      %p65 = por %p63, %p64
      %s66 = ssub.s32 %s28, %s35
      %p67 = scmp.eq.s32.totalorder %s66, 0
      %s69 = sadd.s32 %s68, 1
      %s70 = scalar_select %p67, %s68, %s69
      %p73 = pneg %p67
      %p74 = scmp.eq.s32.totalorder %s20, 1
      %p75 = por %p73, %p74
      %p76 = scmp.ne.s32.totalorder %s68, %s71
      %p77 = scmp.eq.s32.totalorder %s20, 0
      %p78 = por %p76, %p77
      %p79 = scmp.ne.s32.totalorder %s68, %s71
      %p80 = scmp.eq.s32.totalorder %s25, 1
      %p81 = por %p79, %p80
      %p82 = scmp.ne.s32.totalorder %s71, %s72
      %p83 = scmp.eq.s32.totalorder %s25, 0
      %p84 = por %p82, %p83
      %p85 = scmp.ne.s32.totalorder %s71, %s72
      %p86 = scmp.eq.s32.totalorder %s26, 1
      %p87 = por %p85, %p86
      %p89 = scmp.ne.s32.totalorder %s72, %s88
      %p90 = scmp.eq.s32.totalorder %s26, 0
      %p91 = por %p89, %p90
      %s92 = ssub.s32 %s27, %s39
      %s93 = ssub.s32 %s28, %s35
      %s94 = sor.u32 %s92, %s93
      %p95 = scmp.eq.s32.totalorder %s94, 0
      %s97 = sadd.s32 %s96, 1
      %s98 = scalar_select %p95, %s96, %s97
      %p101 = pneg %p95
      %p102 = scmp.eq.s32.totalorder %s20, 1
      %p103 = por %p101, %p102
      %p104 = scmp.ne.s32.totalorder %s96, %s99
      %p105 = scmp.eq.s32.totalorder %s20, 0
      %p106 = por %p104, %p105
      %p107 = scmp.ne.s32.totalorder %s96, %s99
      %p108 = scmp.eq.s32.totalorder %s25, 1
      %p109 = por %p107, %p108
      %p110 = scmp.ne.s32.totalorder %s99, %s100
      %p111 = scmp.eq.s32.totalorder %s25, 0
      %p112 = por %p110, %p111
      %p113 = scmp.ne.s32.totalorder %s99, %s100
      %p114 = scmp.eq.s32.totalorder %s26, 1
      %p115 = por %p113, %p114
      %p117 = scmp.ne.s32.totalorder %s100, %s116
      %p118 = scmp.eq.s32.totalorder %s26, 0
      %p119 = por %p117, %p118
      %s120 = ssub.s32 %s27, %s39
      %s121 = ssub.s32 %s28, %s35
      %s122 = sor.u32 %s120, %s121
      %p123 = scmp.eq.s32.totalorder %s122, 0
      %s125 = sadd.s32 %s124, 1
      %s126 = scalar_select %p123, %s124, %s125
      %p129 = pneg %p123
      %p130 = scmp.eq.s32.totalorder %s20, 1
      %p131 = por %p129, %p130
      %p132 = scmp.ne.s32.totalorder %s124, %s127
      %p133 = scmp.eq.s32.totalorder %s20, 0
      %p134 = por %p132, %p133
      %p135 = scmp.ne.s32.totalorder %s124, %s127
      %p136 = scmp.eq.s32.totalorder %s25, 1
      %p137 = por %p135, %p136
      %p138 = scmp.ne.s32.totalorder %s127, %s128
      %p139 = scmp.eq.s32.totalorder %s25, 0
      %p140 = por %p138, %p139
      %p141 = scmp.ne.s32.totalorder %s127, %s128
      %p142 = scmp.eq.s32.totalorder %s26, 1
      %p143 = por %p141, %p142
      %p145 = scmp.ne.s32.totalorder %s128, %s144
      %p146 = scmp.eq.s32.totalorder %s26, 0
      %p147 = por %p145, %p146
      %p148 = scmp.le.s32.totalorder 1, %s20
      %p149 = scmp.lt.s32.totalorder %s20, 3
      %p150 = pnand %p148, %p149
      %p151 = pneg %p150
      // Predicated region
      $region9: #{tpu_custom_call.1} parent=5 // pred_check
        _
      $region10: #{tpu_custom_call.1} parent=5 // pred_check_branch
        %153 = sbr.rel (%p150) target = $region12
      $region11: #{tpu_custom_call.1} parent=5 // pred_region
        %s154 = ssub.s32 %s20, 1
        // Predicated region
        $region13: #{tpu_custom_call.1} parent=11 // pred_check
          %p155 = pneg %p84
        $region14: #{tpu_custom_call.1} parent=11 // pred_check_branch
          %157 = sbr.rel (%p155) target = $region16
        $region15: #{tpu_custom_call.1} parent=11 // pred_region
          %s159 = ssub.s32 2048, 2048
          %160 = vsyncadd [#allocation6], %s159
          %s161 = smul.addr %s30, 128
          %s162 = scalar_lea.hbm %s1, %s161
          %s163 = sshll.u32 [#allocation5], 4
          %s164 = int_to_ptr.vmem [resolvable:$true] %s163
          %169 = dma.hbm_to_vmem [thread:$0]  %s162, 2048, %s164, [#allocation6], 128, 128, 8
        $region16: #{tpu_custom_call.1} parent=11 // pred_fallthru
          _
      $region12: #{tpu_custom_call.1} parent=5 // pred_fallthru
        _
      %p170 = scmp.lt.s32.totalorder %s20, 2
      // Predicated region
      $region17: #{tpu_custom_call.1} parent=5 // pred_check
        %p171 = pneg %p170
      $region18: #{tpu_custom_call.1} parent=5 // pred_check_branch
        %173 = sbr.rel (%p171) target = $region20
      $region19: #{tpu_custom_call.1} parent=5 // pred_region
        // Predicated region
        $region21: #{tpu_custom_call.1} parent=19 // pred_check
          %p174 = pneg %p52
        $region22: #{tpu_custom_call.1} parent=19 // pred_check_branch
          %176 = sbr.rel (%p174) target = $region24
        $region23: #{tpu_custom_call.1} parent=19 // pred_region
          %s177 = sand.u32 %s42, 1
          %s178 = scalar_lea.sflag [#allocation3], %s177
          %s179 = sand.u32 %s42, 1
          %s180 = smul.addr %s179, 256
          %s181 = scalar_lea.vmem [#allocation2], %s180
          %s182 = smul.u32 32, %s27
          %s184 = ssub.s32 4096, 4096
          %185 = vsyncadd %s178, %s184
          %s186 = smul.addr %s182, 128
          %s187 = scalar_lea.hbm %s0, %s186
          %s188 = sshll.u32 %s181, 4
          %s189 = int_to_ptr.vmem [resolvable:$true] %s188
          %194 = dma.hbm_to_vmem [thread:$0]  %s187, 4096, %s189, %s178, 128, 128, 8
        $region24: #{tpu_custom_call.1} parent=19 // pred_fallthru
          _
      $region20: #{tpu_custom_call.1} parent=5 // pred_fallthru
        _
      %p195 = scmp.le.s32.totalorder 1, %s20
      %p196 = scmp.lt.s32.totalorder %s20, 3
      %p197 = pnand %p195, %p196
      %p198 = pneg %p197
      // Predicated region
      $region25: #{tpu_custom_call.1} parent=5 // pred_check
        _
      $region26: #{tpu_custom_call.1} parent=5 // pred_check_branch
        %200 = sbr.rel (%p197) target = $region28
      $region27: #{tpu_custom_call.1} parent=5 // pred_region
        %s201 = ssub.s32 %s20, 1
        %s202 = sand.u32 %s45, 1
        %s203 = scalar_lea.sflag [#allocation3], %s202
        %s204 = sand.u32 %s45, 1
        %s205 = smul.addr %s204, 256
        %s206 = scalar_lea.vmem [#allocation2], %s205
        // Predicated region
        $region29: #{tpu_custom_call.1} parent=27 // pred_check
          %p207 = pneg %p58
        $region30: #{tpu_custom_call.1} parent=27 // pred_check_branch
          %209 = sbr.rel (%p207) target = $region32
        $region31: #{tpu_custom_call.1} parent=27 // pred_region
          %210 = dma.done %s203, 4096
        $region32: #{tpu_custom_call.1} parent=27 // pred_fallthru
          _
        // Predicated region
        $region33: #{tpu_custom_call.1} parent=27 // pred_check
          %p211 = pneg %p84
        $region34: #{tpu_custom_call.1} parent=27 // pred_check_branch
          %213 = sbr.rel (%p211) target = $region36
        $region35: #{tpu_custom_call.1} parent=27 // pred_region
          %214 = dma.done [#allocation6], 2048
        $region36: #{tpu_custom_call.1} parent=27 // pred_fallthru
          _
        %s215 = sand.u32 %s45, 1
        %s216 = scalar_lea.sflag [#allocation3], %s215
        %s217 = sand.u32 %s45, 1
        %s218 = smul.addr %s217, 256
        %s219 = scalar_lea.vmem [#allocation2], %s218
        %p220 = pneg %p58
        %p221 = pneg %p55
        %p222 = pneg %p84
        %p223 = pneg %p81
        %p224 = pneg %p112
        %p225 = pneg %p109
        %s226 = sand.u32 %s99, 1
        %s227 = scalar_lea.sflag [#allocation4], %s226
        %s228 = sand.u32 %s99, 1
        %s229 = smul.addr %s228, 256
        %s230 = scalar_lea.vmem [#allocation7], %s229
        %p231 = pneg %p140
        %p232 = pneg %p137
        %s233 = sand.u32 %s127, 1
        %s234 = scalar_lea.sflag [#allocation9], %s233
        %s235 = sand.u32 %s127, 1
        %s236 = smul.addr %s235, 8
        %s237 = scalar_lea.vmem [#allocation8], %s236
        %s238 = smul.u32 32, %s29
        %s239 = smul.u32 32, %s29
        %v240 = vld [vmem:[%s206] sm:$0xff]
        %v241 = vld [vmem:[%s206 + $0x8] sm:$0xff]
        %v242 = vld [vmem:[%s206 + $0x10] sm:$0xff]
        %v243 = vld [vmem:[%s206 + $0x18] sm:$0xff]
        %v244 = vld [vmem:[%s206 + $0x20] sm:$0xff]
        %v245 = vld [vmem:[%s206 + $0x28] sm:$0xff]
        %v246 = vld [vmem:[%s206 + $0x30] sm:$0xff]
        %v247 = vld [vmem:[%s206 + $0x38] sm:$0xff]
        %v248 = vld [vmem:[%s206 + $0x40] sm:$0xff]
        %v249 = vld [vmem:[%s206 + $0x48] sm:$0xff]
        %v250 = vld [vmem:[%s206 + $0x50] sm:$0xff]
        %v251 = vld [vmem:[%s206 + $0x58] sm:$0xff]
        %v252 = vld [vmem:[%s206 + $0x60] sm:$0xff]
        %v253 = vld [vmem:[%s206 + $0x68] sm:$0xff]
        %v254 = vld [vmem:[%s206 + $0x70] sm:$0xff]
        %v255 = vld [vmem:[%s206 + $0x78] sm:$0xff]
        %v256 = vld [vmem:[%s206 + $0x80] sm:$0xff]
        %v257 = vld [vmem:[%s206 + $0x88] sm:$0xff]
        %v258 = vld [vmem:[%s206 + $0x90] sm:$0xff]
        %v259 = vld [vmem:[%s206 + $0x98] sm:$0xff]
        %v260 = vld [vmem:[%s206 + $0xa0] sm:$0xff]
        %v261 = vld [vmem:[%s206 + $0xa8] sm:$0xff]
        %v262 = vld [vmem:[%s206 + $0xb0] sm:$0xff]
        %v263 = vld [vmem:[%s206 + $0xb8] sm:$0xff]
        %v264 = vld [vmem:[%s206 + $0xc0] sm:$0xff]
        %v265 = vld [vmem:[%s206 + $0xc8] sm:$0xff]
        %v266 = vld [vmem:[%s206 + $0xd0] sm:$0xff]
        %v267 = vld [vmem:[%s206 + $0xd8] sm:$0xff]
        %v268 = vld [vmem:[%s206 + $0xe0] sm:$0xff]
        %v269 = vld [vmem:[%s206 + $0xe8] sm:$0xff]
        %v270 = vld [vmem:[%s206 + $0xf0] sm:$0xff]
        %v271 = vld [vmem:[%s206 + $0xf8] sm:$0xff]
        %v272 = vld [vmem:[#allocation5] sm:$0xff]
        %v273 = vld [vmem:[#allocation5 + $0x8] sm:$0xff]
        %v274 = vld [vmem:[#allocation5 + $0x10] sm:$0xff]
        %v275 = vld [vmem:[#allocation5 + $0x18] sm:$0xff]
        %v276 = vld [vmem:[#allocation5 + $0x20] sm:$0xff]
        %v277 = vld [vmem:[#allocation5 + $0x28] sm:$0xff]
        %v278 = vld [vmem:[#allocation5 + $0x30] sm:$0xff]
        %v279 = vld [vmem:[#allocation5 + $0x38] sm:$0xff]
        %v280 = vld [vmem:[#allocation5 + $0x40] sm:$0xff]
        %v281 = vld [vmem:[#allocation5 + $0x48] sm:$0xff]
        %v282 = vld [vmem:[#allocation5 + $0x50] sm:$0xff]
        %v283 = vld [vmem:[#allocation5 + $0x58] sm:$0xff]
        %v284 = vld [vmem:[#allocation5 + $0x60] sm:$0xff]
        %v285 = vld [vmem:[#allocation5 + $0x68] sm:$0xff]
        %v286 = vld [vmem:[#allocation5 + $0x70] sm:$0xff]
        %v287 = vld [vmem:[#allocation5 + $0x78] sm:$0xff]
        %288 = vmatprep.subr.mxu0 0.0
        %289 = vmatpush1.msra.mxu0 %v272
        %290 = vmatprep.subr.mxu0 0.0
        %291 = vmatpush1.msra.mxu0 %v273
        %292 = vmatprep.subr.mxu0 0.0
        %293 = vmatpush1.msra.mxu0 %v274
        %294 = vmatprep.subr.mxu0 0.0
        %295 = vmatpush1.msra.mxu0 %v275
        %296 = vmatprep.subr.mxu0 0.0
        %297 = vmatpush1.msra.mxu0 %v276
        %298 = vmatprep.subr.mxu0 0.0
        %299 = vmatpush1.msra.mxu0 %v277
        %300 = vmatprep.subr.mxu0 0.0
        %301 = vmatpush1.msra.mxu0 %v278
        %302 = vmatprep.subr.mxu0 0.0
        %303 = vmatpush1.msra.mxu0 %v279
        %304 = vmatprep.subr.mxu0 0.0
        %305 = vmatpush1.msra.mxu0 %v280
        %306 = vmatprep.subr.mxu0 0.0
        %307 = vmatpush1.msra.mxu0 %v281
        %308 = vmatprep.subr.mxu0 0.0
        %309 = vmatpush1.msra.mxu0 %v282
        %310 = vmatprep.subr.mxu0 0.0
        %311 = vmatpush1.msra.mxu0 %v283
        %312 = vmatprep.subr.mxu0 0.0
        %313 = vmatpush1.msra.mxu0 %v284
        %314 = vmatprep.subr.mxu0 0.0
        %315 = vmatpush1.msra.mxu0 %v285
        %316 = vmatprep.subr.mxu0 0.0
        %317 = vmatpush1.msra.mxu0 %v286
        %318 = vmatprep.subr.mxu0 0.0
        %319 = vmatpush1.msra.mxu0 %v287
        %320 = vmatprep.subr.mxu0 0.0
        %321 = vmatpush1.msra.mxu0 0.0
        %322 = vmatprep.subr.mxu0 0.0
        %323 = vmatpush1.msra.mxu0 0.0
        %324 = vmatprep.subr.mxu0 0.0
        %325 = vmatpush1.msra.mxu0 0.0
        %326 = vmatprep.subr.mxu0 0.0
        %327 = vmatpush1.msra.mxu0 0.0
        %328 = vmatprep.subr.mxu0 0.0
        %329 = vmatpush1.msra.mxu0 0.0
        %330 = vmatprep.subr.mxu0 0.0
        %331 = vmatpush1.msra.mxu0 0.0
        %332 = vmatprep.subr.mxu0 0.0
        %333 = vmatpush1.msra.mxu0 0.0
        %334 = vmatprep.subr.mxu0 0.0
        %335 = vmatpush1.msra.mxu0 0.0
        %336 = vmatprep.subr.mxu0 0.0
        %337 = vmatpush1.msra.mxu0 0.0
        %338 = vmatprep.subr.mxu0 0.0
        %339 = vmatpush1.msra.mxu0 0.0
        %340 = vmatprep.subr.mxu0 0.0
        %341 = vmatpush1.msra.mxu0 0.0
        %342 = vmatprep.subr.mxu0 0.0
        %343 = vmatpush1.msra.mxu0 0.0
        %344 = vmatprep.subr.mxu0 0.0
        %345 = vmatpush1.msra.mxu0 0.0
        %346 = vmatprep.subr.mxu0 0.0
        %347 = vmatpush1.msra.mxu0 0.0
        %348 = vmatprep.subr.mxu0 0.0
        %349 = vmatpush1.msra.mxu0 0.0
        %350 = vmatprep.subr.mxu0 0.0
        %351 = vmatpush1.msra.mxu0 0.0
        %352 = vmatprep.mubr.f32.mxu0 0.0
        %353 = vmatmul.mubr.f32.gmra.mrb[0].mxu0 %v240
        %v354 = vpop.f32.mrb[0].mxu0
        %v355 = vadd.f32 0.0, %v354
        %v356 = vpop.f32.mrb[0].mxu0
        %357 = vmatprep.mubr.f32.mxu0 0.0
        %358 = vmatmul.mubr.f32.gmra.mrb[0].mxu0 %v241
        %v359 = vpop.f32.mrb[0].mxu0
        %v360 = vadd.f32 0.0, %v359
        %v361 = vpop.f32.mrb[0].mxu0
        %362 = vmatprep.mubr.f32.mxu0 0.0
        %363 = vmatmul.mubr.f32.gmra.mrb[0].mxu0 %v242
        %v364 = vpop.f32.mrb[0].mxu0
        %v365 = vadd.f32 0.0, %v364
        %v366 = vpop.f32.mrb[0].mxu0
        %367 = vmatprep.mubr.f32.mxu0 0.0
        %368 = vmatmul.mubr.f32.gmra.mrb[0].mxu0 %v243
        %v369 = vpop.f32.mrb[0].mxu0
        %v370 = vadd.f32 0.0, %v369
        %v371 = vpop.f32.mrb[0].mxu0
        %372 = vmatprep.mubr.f32.mxu0 0.0
        %373 = vmatmul.mubr.f32.gmra.mrb[0].mxu0 %v244
        %v374 = vpop.f32.mrb[0].mxu0
        %v375 = vadd.f32 0.0, %v374
        %v376 = vpop.f32.mrb[0].mxu0
        %377 = vmatprep.mubr.f32.mxu0 0.0
        %378 = vmatmul.mubr.f32.gmra.mrb[0].mxu0 %v245
        %v379 = vpop.f32.mrb[0].mxu0
        %v380 = vadd.f32 0.0, %v379
        %v381 = vpop.f32.mrb[0].mxu0
        %382 = vmatprep.mubr.f32.mxu0 0.0
        %383 = vmatmul.mubr.f32.gmra.mrb[0].mxu0 %v246
        %v384 = vpop.f32.mrb[0].mxu0
        %v385 = vadd.f32 0.0, %v384
        %v386 = vpop.f32.mrb[0].mxu0
        %387 = vmatprep.mubr.f32.mxu0 0.0
        %388 = vmatmul.mubr.f32.gmra.mrb[0].mxu0 %v247
        %v389 = vpop.f32.mrb[0].mxu0
        %v390 = vadd.f32 0.0, %v389
        %v391 = vpop.f32.mrb[0].mxu0
        %392 = vmatprep.mubr.f32.mxu0 0.0
        %393 = vmatmul.mubr.f32.gmra.mrb[0].mxu0 %v248
        %v394 = vpop.f32.mrb[0].mxu0
        %v395 = vadd.f32 0.0, %v394
        %v396 = vpop.f32.mrb[0].mxu0
        %397 = vmatprep.mubr.f32.mxu0 0.0
        %398 = vmatmul.mubr.f32.gmra.mrb[0].mxu0 %v249
        %v399 = vpop.f32.mrb[0].mxu0
        %v400 = vadd.f32 0.0, %v399
        %v401 = vpop.f32.mrb[0].mxu0
        %402 = vmatprep.mubr.f32.mxu0 0.0
        %403 = vmatmul.mubr.f32.gmra.mrb[0].mxu0 %v250
        %v404 = vpop.f32.mrb[0].mxu0
        %v405 = vadd.f32 0.0, %v404
        %v406 = vpop.f32.mrb[0].mxu0
        %407 = vmatprep.mubr.f32.mxu0 0.0
        %408 = vmatmul.mubr.f32.gmra.mrb[0].mxu0 %v251
        %v409 = vpop.f32.mrb[0].mxu0
        %v410 = vadd.f32 0.0, %v409
        %v411 = vpop.f32.mrb[0].mxu0
        %412 = vmatprep.mubr.f32.mxu0 0.0
        %413 = vmatmul.mubr.f32.gmra.mrb[0].mxu0 %v252
        %v414 = vpop.f32.mrb[0].mxu0
        %v415 = vadd.f32 0.0, %v414
        %v416 = vpop.f32.mrb[0].mxu0
        %417 = vmatprep.mubr.f32.mxu0 0.0
        %418 = vmatmul.mubr.f32.gmra.mrb[0].mxu0 %v253
        %v419 = vpop.f32.mrb[0].mxu0
        %v420 = vadd.f32 0.0, %v419
        %v421 = vpop.f32.mrb[0].mxu0
        %422 = vmatprep.mubr.f32.mxu0 0.0
        %423 = vmatmul.mubr.f32.gmra.mrb[0].mxu0 %v254
        %v424 = vpop.f32.mrb[0].mxu0
        %v425 = vadd.f32 0.0, %v424
        %v426 = vpop.f32.mrb[0].mxu0
        %427 = vmatprep.mubr.f32.mxu0 0.0
        %428 = vmatmul.mubr.f32.gmra.mrb[0].mxu0 %v255
        %v429 = vpop.f32.mrb[0].mxu0
        %v430 = vadd.f32 0.0, %v429
        %v431 = vpop.f32.mrb[0].mxu0
        %432 = vmatprep.mubr.f32.mxu0 0.0
        %433 = vmatmul.mubr.f32.gmra.mrb[0].mxu0 %v256
        %v434 = vpop.f32.mrb[0].mxu0
        %v435 = vadd.f32 0.0, %v434
        %v436 = vpop.f32.mrb[0].mxu0
        %437 = vmatprep.mubr.f32.mxu0 0.0
        %438 = vmatmul.mubr.f32.gmra.mrb[0].mxu0 %v257
        %v439 = vpop.f32.mrb[0].mxu0
        %v440 = vadd.f32 0.0, %v439
        %v441 = vpop.f32.mrb[0].mxu0
        %442 = vmatprep.mubr.f32.mxu0 0.0
        %443 = vmatmul.mubr.f32.gmra.mrb[0].mxu0 %v258
        %v444 = vpop.f32.mrb[0].mxu0
        %v445 = vadd.f32 0.0, %v444
        %v446 = vpop.f32.mrb[0].mxu0
        %447 = vmatprep.mubr.f32.mxu0 0.0
        %448 = vmatmul.mubr.f32.gmra.mrb[0].mxu0 %v259
        %v449 = vpop.f32.mrb[0].mxu0
        %v450 = vadd.f32 0.0, %v449
        %v451 = vpop.f32.mrb[0].mxu0
        %452 = vmatprep.mubr.f32.mxu0 0.0
        %453 = vmatmul.mubr.f32.gmra.mrb[0].mxu0 %v260
        %v454 = vpop.f32.mrb[0].mxu0
        %v455 = vadd.f32 0.0, %v454
        %v456 = vpop.f32.mrb[0].mxu0
        %457 = vmatprep.mubr.f32.mxu0 0.0
        %458 = vmatmul.mubr.f32.gmra.mrb[0].mxu0 %v261
        %v459 = vpop.f32.mrb[0].mxu0
        %v460 = vadd.f32 0.0, %v459
        %v461 = vpop.f32.mrb[0].mxu0
        %462 = vmatprep.mubr.f32.mxu0 0.0
        %463 = vmatmul.mubr.f32.gmra.mrb[0].mxu0 %v262
        %v464 = vpop.f32.mrb[0].mxu0
        %v465 = vadd.f32 0.0, %v464
        %v466 = vpop.f32.mrb[0].mxu0
        %467 = vmatprep.mubr.f32.mxu0 0.0
        %468 = vmatmul.mubr.f32.gmra.mrb[0].mxu0 %v263
        %v469 = vpop.f32.mrb[0].mxu0
        %v470 = vadd.f32 0.0, %v469
        %v471 = vpop.f32.mrb[0].mxu0
        %472 = vmatprep.mubr.f32.mxu0 0.0
        %473 = vmatmul.mubr.f32.gmra.mrb[0].mxu0 %v264
        %v474 = vpop.f32.mrb[0].mxu0
        %v475 = vadd.f32 0.0, %v474
        %v476 = vpop.f32.mrb[0].mxu0
        %477 = vmatprep.mubr.f32.mxu0 0.0
        %478 = vmatmul.mubr.f32.gmra.mrb[0].mxu0 %v265
        %v479 = vpop.f32.mrb[0].mxu0
        %v480 = vadd.f32 0.0, %v479
        %v481 = vpop.f32.mrb[0].mxu0
        %482 = vmatprep.mubr.f32.mxu0 0.0
        %483 = vmatmul.mubr.f32.gmra.mrb[0].mxu0 %v266
        %v484 = vpop.f32.mrb[0].mxu0
        %v485 = vadd.f32 0.0, %v484
        %v486 = vpop.f32.mrb[0].mxu0
        %487 = vmatprep.mubr.f32.mxu0 0.0
        %488 = vmatmul.mubr.f32.gmra.mrb[0].mxu0 %v267
        %v489 = vpop.f32.mrb[0].mxu0
        %v490 = vadd.f32 0.0, %v489
        %v491 = vpop.f32.mrb[0].mxu0
        %492 = vmatprep.mubr.f32.mxu0 0.0
        %493 = vmatmul.mubr.f32.gmra.mrb[0].mxu0 %v268
        %v494 = vpop.f32.mrb[0].mxu0
        %v495 = vadd.f32 0.0, %v494
        %v496 = vpop.f32.mrb[0].mxu0
        %497 = vmatprep.mubr.f32.mxu0 0.0
        %498 = vmatmul.mubr.f32.gmra.mrb[0].mxu0 %v269
        %v499 = vpop.f32.mrb[0].mxu0
        %v500 = vadd.f32 0.0, %v499
        %v501 = vpop.f32.mrb[0].mxu0
        %502 = vmatprep.mubr.f32.mxu0 0.0
        %503 = vmatmul.mubr.f32.gmra.mrb[0].mxu0 %v270
        %v504 = vpop.f32.mrb[0].mxu0
        %v505 = vadd.f32 0.0, %v504
        %v506 = vpop.f32.mrb[0].mxu0
        %507 = vmatprep.mubr.f32.mxu0 0.0
        %508 = vmatmul.mubr.f32.gmra.mrb[0].mxu0 %v271
        %v509 = vpop.f32.mrb[0].mxu0
        %v510 = vadd.f32 0.0, %v509
        %v511 = vpop.f32.mrb[0].mxu0
        %512 = vdwg.mxu0
        %513 = vst [vmem:[%s230] sm:$0xff] %v355
        %514 = vst [vmem:[%s230 + $0x8] sm:$0xff] %v360
        %515 = vst [vmem:[%s230 + $0x10] sm:$0xff] %v365
        %516 = vst [vmem:[%s230 + $0x18] sm:$0xff] %v370
        %517 = vst [vmem:[%s230 + $0x20] sm:$0xff] %v375
        %518 = vst [vmem:[%s230 + $0x28] sm:$0xff] %v380
        %519 = vst [vmem:[%s230 + $0x30] sm:$0xff] %v385
        %520 = vst [vmem:[%s230 + $0x38] sm:$0xff] %v390
        %521 = vst [vmem:[%s230 + $0x40] sm:$0xff] %v395
        %522 = vst [vmem:[%s230 + $0x48] sm:$0xff] %v400
        %523 = vst [vmem:[%s230 + $0x50] sm:$0xff] %v405
        %524 = vst [vmem:[%s230 + $0x58] sm:$0xff] %v410
        %525 = vst [vmem:[%s230 + $0x60] sm:$0xff] %v415
        %526 = vst [vmem:[%s230 + $0x68] sm:$0xff] %v420
        %527 = vst [vmem:[%s230 + $0x70] sm:$0xff] %v425
        %528 = vst [vmem:[%s230 + $0x78] sm:$0xff] %v430
        %529 = vst [vmem:[%s230 + $0x80] sm:$0xff] %v435
        %530 = vst [vmem:[%s230 + $0x88] sm:$0xff] %v440
        %531 = vst [vmem:[%s230 + $0x90] sm:$0xff] %v445
        %532 = vst [vmem:[%s230 + $0x98] sm:$0xff] %v450
        %533 = vst [vmem:[%s230 + $0xa0] sm:$0xff] %v455
        %534 = vst [vmem:[%s230 + $0xa8] sm:$0xff] %v460
        %535 = vst [vmem:[%s230 + $0xb0] sm:$0xff] %v465
        %536 = vst [vmem:[%s230 + $0xb8] sm:$0xff] %v470
        %537 = vst [vmem:[%s230 + $0xc0] sm:$0xff] %v475
        %538 = vst [vmem:[%s230 + $0xc8] sm:$0xff] %v480
        %539 = vst [vmem:[%s230 + $0xd0] sm:$0xff] %v485
        %540 = vst [vmem:[%s230 + $0xd8] sm:$0xff] %v490
        %541 = vst [vmem:[%s230 + $0xe0] sm:$0xff] %v495
        %542 = vst [vmem:[%s230 + $0xe8] sm:$0xff] %v500
        %543 = vst [vmem:[%s230 + $0xf0] sm:$0xff] %v505
        %544 = vst [vmem:[%s230 + $0xf8] sm:$0xff] %v510
        %545 = vst [vmem:[%s237] sm:$0xff] 0.0
        %v546 = vadd.f32 %v355, %v360
        %v547 = vadd.f32 %v546, %v365
        %v548 = vadd.f32 %v547, %v370
        %v549 = vadd.f32 %v548, %v375
        %v550 = vadd.f32 %v549, %v380
        %v551 = vadd.f32 %v550, %v385
        %v552 = vadd.f32 %v551, %v390
        %v553 = vadd.f32 %v552, %v395
        %v554 = vadd.f32 %v553, %v400
        %v555 = vadd.f32 %v554, %v405
        %v556 = vadd.f32 %v555, %v410
        %v557 = vadd.f32 %v556, %v415
        %v558 = vadd.f32 %v557, %v420
        %v559 = vadd.f32 %v558, %v425
        %v560 = vadd.f32 %v559, %v430
        %v561 = vadd.f32 %v560, %v435
        %v562 = vadd.f32 %v561, %v440
        %v563 = vadd.f32 %v562, %v445
        %v564 = vadd.f32 %v563, %v450
        %v565 = vadd.f32 %v564, %v455
        %v566 = vadd.f32 %v565, %v460
        %v567 = vadd.f32 %v566, %v465
        %v568 = vadd.f32 %v567, %v470
        %v569 = vadd.f32 %v568, %v475
        %v570 = vadd.f32 %v569, %v480
        %v571 = vadd.f32 %v570, %v485
        %v572 = vadd.f32 %v571, %v490
        %v573 = vadd.f32 %v572, %v495
        %v574 = vadd.f32 %v573, %v500
        %v575 = vadd.f32 %v574, %v505
        %v576 = vadd.f32 %v575, %v510
        %v577 = vrot.slane %v576, 4
        %v578 = vadd.f32 %v576, %v577
        %v579 = vrot.slane %v578, 2
        %v580 = vadd.f32 %v578, %v579
        %v581 = vrot.slane %v580, 1
        %v582 = vadd.f32 %v580, %v581
        %583 = vst [vmem:[%s237] sm:$0x1] %v582
        %v584 = vmul.f32 %v355, %v355
        %v585 = vmul.f32 %v360, %v360
        %v586 = vmul.f32 %v365, %v365
        %v587 = vmul.f32 %v370, %v370
        %v588 = vmul.f32 %v375, %v375
        %v589 = vmul.f32 %v380, %v380
        %v590 = vmul.f32 %v385, %v385
        %v591 = vmul.f32 %v390, %v390
        %v592 = vmul.f32 %v395, %v395
        %v593 = vmul.f32 %v400, %v400
        %v594 = vmul.f32 %v405, %v405
        %v595 = vmul.f32 %v410, %v410
        %v596 = vmul.f32 %v415, %v415
        %v597 = vmul.f32 %v420, %v420
        %v598 = vmul.f32 %v425, %v425
        %v599 = vmul.f32 %v430, %v430
        %v600 = vmul.f32 %v435, %v435
        %v601 = vmul.f32 %v440, %v440
        %v602 = vmul.f32 %v445, %v445
        %v603 = vmul.f32 %v450, %v450
        %v604 = vmul.f32 %v455, %v455
        %v605 = vmul.f32 %v460, %v460
        %v606 = vmul.f32 %v465, %v465
        %v607 = vmul.f32 %v470, %v470
        %v608 = vmul.f32 %v475, %v475
        %v609 = vmul.f32 %v480, %v480
        %v610 = vmul.f32 %v485, %v485
        %v611 = vmul.f32 %v490, %v490
        %v612 = vmul.f32 %v495, %v495
        %v613 = vmul.f32 %v500, %v500
        %v614 = vmul.f32 %v505, %v505
        %v615 = vmul.f32 %v510, %v510
        %v616 = vadd.f32 %v584, %v585
        %v617 = vadd.f32 %v616, %v586
        %v618 = vadd.f32 %v617, %v587
        %v619 = vadd.f32 %v618, %v588
        %v620 = vadd.f32 %v619, %v589
        %v621 = vadd.f32 %v620, %v590
        %v622 = vadd.f32 %v621, %v591
        %v623 = vadd.f32 %v622, %v592
        %v624 = vadd.f32 %v623, %v593
        %v625 = vadd.f32 %v624, %v594
        %v626 = vadd.f32 %v625, %v595
        %v627 = vadd.f32 %v626, %v596
        %v628 = vadd.f32 %v627, %v597
        %v629 = vadd.f32 %v628, %v598
        %v630 = vadd.f32 %v629, %v599
        %v631 = vadd.f32 %v630, %v600
        %v632 = vadd.f32 %v631, %v601
        %v633 = vadd.f32 %v632, %v602
        %v634 = vadd.f32 %v633, %v603
        %v635 = vadd.f32 %v634, %v604
        %v636 = vadd.f32 %v635, %v605
        %v637 = vadd.f32 %v636, %v606
        %v638 = vadd.f32 %v637, %v607
        %v639 = vadd.f32 %v638, %v608
        %v640 = vadd.f32 %v639, %v609
        %v641 = vadd.f32 %v640, %v610
        %v642 = vadd.f32 %v641, %v611
        %v643 = vadd.f32 %v642, %v612
        %v644 = vadd.f32 %v643, %v613
        %v645 = vadd.f32 %v644, %v614
        %v646 = vadd.f32 %v645, %v615
        %v647 = vrot.slane %v646, 4
        %v648 = vadd.f32 %v646, %v647
        %v649 = vrot.slane %v648, 2
        %v650 = vadd.f32 %v648, %v649
        %v651 = vrot.slane %v650, 1
        %v652 = vadd.f32 %v650, %v651
        %653 = vst [vmem:[%s237 + $0x1] sm:$0x1] %v652
        %s654 = sand.u32 %s99, 1
        %s655 = scalar_lea.sflag [#allocation4], %s654
        %s656 = sand.u32 %s99, 1
        %s657 = smul.addr %s656, 256
        %s658 = scalar_lea.vmem [#allocation7], %s657
        %s659 = sand.u32 %s127, 1
        %s660 = scalar_lea.sflag [#allocation9], %s659
        %s661 = sand.u32 %s127, 1
        %s662 = smul.addr %s661, 8
        %s663 = scalar_lea.vmem [#allocation8], %s662
        // Predicated region
        $region37: #{tpu_custom_call.1} parent=27 // pred_check
          %p664 = pneg %p109
        $region38: #{tpu_custom_call.1} parent=27 // pred_check_branch
          %666 = sbr.rel (%p664) target = $region40
        $region39: #{tpu_custom_call.1} parent=27 // pred_region
          %s667 = smul.u32 32, %s29
          %s669 = ssub.s32 4096, 4096
          %670 = vsyncadd %s655, %s669
          %s671 = sadd.s32 %s30, %s667
          %s672 = smul.addr %s671, 128
          %s673 = scalar_lea.hbm %s2, %s672
          %s674 = sshll.u32 %s658, 4
          %s675 = int_to_ptr.vmem [resolvable:$true] %s674
          %680 = dma.vmem_to_hbm [thread:$0]  %s675, 4096, %s673, %s655, 128, 128, 8
        $region40: #{tpu_custom_call.1} parent=27 // pred_fallthru
          _
        // Predicated region
        $region41: #{tpu_custom_call.1} parent=27 // pred_check
          %p681 = pneg %p137
        $region42: #{tpu_custom_call.1} parent=27 // pred_check_branch
          %683 = sbr.rel (%p681) target = $region44
        $region43: #{tpu_custom_call.1} parent=27 // pred_region
          %s685 = ssub.s32 128, 128
          %686 = vsyncadd %s660, %s685
          %s687 = sadd.s32 %s30, %s29
          %s688 = smul.addr %s687, 128
          %s689 = scalar_lea.hbm %s3, %s688
          %s691 = sshll.u32 %s663, 4
          %s692 = int_to_ptr.vmem [resolvable:$true] %s691
          %694 = dma.vmem_to_hbm [thread:$0]  %s692, 128, %s689, %s660
        $region44: #{tpu_custom_call.1} parent=27 // pred_fallthru
          _
      $region28: #{tpu_custom_call.1} parent=5 // pred_fallthru
        _
      %p695 = scmp.le.s32.totalorder 2, %s20
      // Predicated region
      $region45: #{tpu_custom_call.1} parent=5 // pred_check
        %p696 = pneg %p695
      $region46: #{tpu_custom_call.1} parent=5 // pred_check_branch
        %698 = sbr.rel (%p696) target = $region48
      $region47: #{tpu_custom_call.1} parent=5 // pred_region
        %s699 = ssub.s32 %s20, 2
        // Predicated region
        $region49: #{tpu_custom_call.1} parent=47 // pred_check
          %p700 = pneg %p115
        $region50: #{tpu_custom_call.1} parent=47 // pred_check_branch
          %702 = sbr.rel (%p700) target = $region52
        $region51: #{tpu_custom_call.1} parent=47 // pred_region
          %s703 = sand.u32 %s100, 1
          %s704 = scalar_lea.sflag [#allocation4], %s703
          %s705 = sand.u32 %s100, 1
          %s706 = smul.addr %s705, 256
          %s707 = scalar_lea.vmem [#allocation7], %s706
          %708 = dma.done %s704, 4096
        $region52: #{tpu_custom_call.1} parent=47 // pred_fallthru
          _
        // Predicated region
        $region53: #{tpu_custom_call.1} parent=47 // pred_check
          %p709 = pneg %p143
        $region54: #{tpu_custom_call.1} parent=47 // pred_check_branch
          %711 = sbr.rel (%p709) target = $region56
        $region55: #{tpu_custom_call.1} parent=47 // pred_region
          %s712 = sand.u32 %s128, 1
          %s713 = scalar_lea.sflag [#allocation9], %s712
          %s714 = sand.u32 %s128, 1
          %s715 = smul.addr %s714, 8
          %s716 = scalar_lea.vmem [#allocation8], %s715
          %717 = dma.done %s713, 128
        $region56: #{tpu_custom_call.1} parent=47 // pred_fallthru
          _
      $region48: #{tpu_custom_call.1} parent=5 // pred_fallthru
        _
    $region6: #{tpu_custom_call.1} parent=1 // loop_footer
      %s24 = sadd.s32 1, %s20
    $region7: #{tpu_custom_call.1} parent=1 // loop_footer_branch
      %19 = sbr.rel target = $region3
    $region8: #{tpu_custom_call.1} parent=1 // loop_exit
      _
    %718 = vsyncpa [#allocation3], 1
    %s719 = scalar_lea.sflag [#allocation3], 1
    %720 = vsyncpa %s719, 1
    %721 = vsyncpa [#allocation6], 1
    %722 = vsyncpa [#allocation4], 1
    %s723 = scalar_lea.sflag [#allocation4], 1
    %724 = vsyncpa %s723, 1
    %725 = vsyncpa [#allocation9], 1
    %s726 = scalar_lea.sflag [#allocation9], 1
    %727 = vsyncpa %s726, 1

</llo_original>
